<compile_context>
chip_gen: v7x
topology: tpu7x:2x2x1
jax: 0.10.0
libtpu: 0.0.40
codegen_flags: <defaults>
</compile_context>

<pallas_src>
import functools
import math

import jax
import jax.numpy as jnp
from jax.experimental import pallas as pl
from jax.experimental.pallas import tpu as pltpu


def _multi_task_loss_kernel(seg_ref, mask_ref, cls_ref, label_ref, out_ref, seg_acc,
                            *, batch, seg_cols, tile_b, tile_s, num_classes,
                            need_row_mask, need_col_mask):
    b = pl.program_id(0)          # batch-tile index  ("parallel")
    s = pl.program_id(1)          # feature-tile index ("arbitrary" reduction axis)

    @pl.when(s == 0)
    def _init():
        seg_acc[...] = jnp.zeros_like(seg_acc)

    # ---- segmentation term: BCE-with-logits on this (tile_b, tile_s) chunk ----
    x = seg_ref[...].astype(jnp.float32)
    y = mask_ref[...].astype(jnp.float32)
    # numerically stable: max(x, 0) - x*y + log(1 + exp(-|x|))
    # (exp(-|x|) <= 1, so log(1+u) stays within ~1e-7 of log1p; avoids relying on a
    #  log1p lowering.)
    bce = jnp.maximum(x, 0.0) - x * y + jnp.log(1.0 + jnp.exp(-jnp.abs(x)))

    row_valid = None
    if need_row_mask:
        row_ids = b * tile_b + jax.lax.broadcasted_iota(jnp.int32, (tile_b, 1), 0)
        row_valid = row_ids < batch
    if need_col_mask:
        col_ids = s * tile_s + jax.lax.broadcasted_iota(jnp.int32, (1, tile_s), 1)
        col_valid = col_ids < seg_cols
    # Mask once, on the final per-element term (cheaper than masking x and y).
    if need_row_mask and need_col_mask:
        bce = jnp.where(jnp.logical_and(row_valid, col_valid), bce, 0.0)
    elif need_row_mask:
        bce = jnp.where(row_valid, bce, 0.0)
    elif need_col_mask:
        bce = jnp.where(col_valid, bce, 0.0)

    # Pure elementwise VPU accumulation; the cross-lane reduce is deferred to finalize.
    seg_acc[...] += bce

    # ---- finalize (once per batch tile): cross-entropy on the resident cls block ----
    @pl.when(s == pl.num_programs(1) - 1)
    def _finalize():
        logits = cls_ref[...].astype(jnp.float32)            # (tile_b, C)
        labels = label_ref[...]                              # (tile_b, 1) int32
        row_max = jnp.max(logits, axis=1, keepdims=True)
        lse = jnp.log(jnp.sum(jnp.exp(logits - row_max), axis=1, keepdims=True)) + row_max
        col = jax.lax.broadcasted_iota(jnp.int32, (tile_b, num_classes), 1)
        picked = jnp.sum(jnp.where(col == labels, logits, 0.0), axis=1, keepdims=True)
        ce_rows = lse - picked                               # (tile_b, 1)
        if need_row_mask:
            ce_rows = jnp.where(row_valid, ce_rows, 0.0)

        seg_scale = 1.0 / float(batch * seg_cols)
        cls_scale = 1.0 / float(batch)
        partial = jnp.sum(seg_acc[...]) * seg_scale + jnp.sum(ce_rows) * cls_scale
        # Lane-dense unmasked full-block store; the wrapper reads element [b, 0, 0].
        out_ref[...] = partial * jnp.ones(out_ref.shape, jnp.float32)


def _vmem_limit_bytes():
    """Half of physical VMEM (v5e/v6e: 64 MiB of 128; v7x: 32 MiB of 64)."""
    try:
        cap = int(pltpu.get_tpu_info().vmem_capacity_bytes)
    except Exception:
        cap = 64 * 1024 * 1024          # conservative fallback: v7x-sized VMEM
    return max(32 * 1024 * 1024, min(cap // 2, 64 * 1024 * 1024))


def _choose_tiles(B, S, C, seg_itemsize, cls_itemsize,
                  target_block_bytes=3 * 1024 * 1024):
    """Pick (tile_b, tile_s): lane-dense S chunks (multiple of 128, or full S) and a
    sublane-aligned batch tile, sized (itemsize-aware) so the double-buffered seg+mask
    blocks plus the f32 accumulator stay well under every generation's VMEM limit."""
    row_align = max(8, 32 // max(1, int(seg_itemsize)))   # 8 f32, 16 bf16, 32 int8
    # Feature tile: full S if a minimal (row_align x S) block fits the per-buffer
    # target, otherwise the largest multiple of 128 that does.
    max_ts = max(128, target_block_bytes // (row_align * seg_itemsize))
    ts = S if S <= max_ts else (max_ts // 128) * 128
    # Batch tile: grow toward the per-buffer target, bounded by B and the cls block.
    if B <= row_align:
        tb = B
    else:
        cap = target_block_bytes // max(1, ts * seg_itemsize)
        cap = min(cap, target_block_bytes // max(1, C * cls_itemsize))
        cap = max(cap, row_align)
        tb = min((B // row_align) * row_align, (cap // row_align) * row_align)
        tb = max(tb, row_align)
    return int(tb), int(ts)


def multi_task_loss(seg_output, mask, cls_output, label, *, tile_b=None, tile_s=None):
    """Pallas TPU implementation of MultiTaskLoss.forward with
    seg_loss = BCEWithLogitsLoss(mean), cls_loss = CrossEntropyLoss(mean)."""
    B = int(seg_output.shape[0])
    S = int(math.prod(seg_output.shape[1:]))
    C = int(cls_output.shape[-1])

    seg2d = seg_output.reshape(B, S)          # stream in incoming dtype (bf16 welcome)
    mask2d = mask.reshape(B, S)
    logits2d = cls_output.reshape(B, C)
    label2d = label.astype(jnp.int32).reshape(B, 1)

    seg_itemsize = max(jnp.dtype(seg2d.dtype).itemsize, jnp.dtype(mask2d.dtype).itemsize)
    cls_itemsize = jnp.dtype(logits2d.dtype).itemsize
    auto_tb, auto_ts = _choose_tiles(B, S, C, seg_itemsize, cls_itemsize)
    tb = int(tile_b) if tile_b is not None else auto_tb
    ts = int(tile_s) if tile_s is not None else auto_ts

    nb = pl.cdiv(B, tb)
    ns = pl.cdiv(S, ts)

    kernel = functools.partial(
        _multi_task_loss_kernel,
        batch=B, seg_cols=S, tile_b=tb, tile_s=ts, num_classes=C,
        need_row_mask=(B % tb != 0), need_col_mask=(S % ts != 0))

    bytes_in = (seg2d.size * seg2d.dtype.itemsize + mask2d.size * mask2d.dtype.itemsize
                + logits2d.size * logits2d.dtype.itemsize + label2d.size * 4)
    cost = pl.CostEstimate(
        flops=int(8 * B * S + 8 * B * C),
        transcendentals=int(2 * B * S + B * C),
        bytes_accessed=int(bytes_in + nb * 8 * 128 * 4))

    partials = pl.pallas_call(
        kernel,
        out_shape=jax.ShapeDtypeStruct((nb, 8, 128), jnp.float32),
        grid_spec=pltpu.PrefetchScalarGridSpec(
            num_scalar_prefetch=0,
            grid=(nb, ns),
            in_specs=[
                pl.BlockSpec((tb, ts), lambda b, s: (b, s)),
                pl.BlockSpec((tb, ts), lambda b, s: (b, s)),
                pl.BlockSpec((tb, C), lambda b, s: (b, 0)),   # resident across S axis
                pl.BlockSpec((tb, 1), lambda b, s: (b, 0)),   # resident across S axis
            ],
            out_specs=pl.BlockSpec((1, 8, 128), lambda b, s: (b, 0, 0)),
            scratch_shapes=[pltpu.VMEM((tb, ts), jnp.float32)],   # per-batch-tile BCE acc
        ),
        compiler_params=pltpu.CompilerParams(
            dimension_semantics=("parallel", "arbitrary"),
            vmem_limit_bytes=_vmem_limit_bytes(),
        ),
        cost_estimate=cost,
    )(seg2d, mask2d, logits2d, label2d)

    # Each batch tile wrote its already-globally-scaled partial; sum them up.
    return jnp.sum(partials[:, 0, 0])


def _reference(seg_output, mask, cls_output, label):
    """Pure-JAX reference: BCEWithLogits(mean) + CrossEntropy(mean)."""
    x = seg_output.astype(jnp.float32)
    y = mask.astype(jnp.float32)
    bce = jnp.maximum(x, 0.0) - x * y + jnp.log1p(jnp.exp(-jnp.abs(x)))
    seg_loss = jnp.mean(bce)
    logp = jax.nn.log_softmax(cls_output.astype(jnp.float32), axis=-1)
    ce = -jnp.mean(jnp.take_along_axis(logp, label.reshape(-1, 1), axis=1))
    return seg_loss + ce


if __name__ == "__main__":
    # 12 rows with tile_b=8 exercises batch-tail masking; S=240 with tile_s=128
    # exercises the feature-tail masking of the new S-tiled grid.
    B, C_SEG, H, W = 12, 1, 12, 20
    NUM_CLASSES = 16

    key = jax.random.PRNGKey(0)
    k1, k2, k3, k4 = jax.random.split(key, 4)
    seg_output = jax.random.normal(k1, (B, C_SEG, H, W), dtype=jnp.float32)
    mask = jax.random.uniform(k2, (B, C_SEG, H, W), dtype=jnp.float32)
    cls_output = jax.random.normal(k3, (B, NUM_CLASSES), dtype=jnp.float32)
    label = jax.random.randint(k4, (B,), 0, NUM_CLASSES, dtype=jnp.int32)

    ref = _reference(seg_output, mask, cls_output, label)

    # Explicit tiles: 2x2 grid, both batch-tail and feature-tail padding masked.
    out1 = jax.block_until_ready(
        multi_task_loss(seg_output, mask, cls_output, label, tile_b=8, tile_s=128))
    assert jnp.allclose(out1, ref, rtol=1e-5, atol=1e-5), (out1, ref)

    # Auto-chosen tiles (full-S feature tile for this small map).
    out2 = jax.block_until_ready(multi_task_loss(seg_output, mask, cls_output, label))
    assert jnp.allclose(out2, ref, rtol=1e-5, atol=1e-5), (out2, ref)

    print("KERNEL_OK")
</pallas_src>

<mosaic_0001>
module attributes {stable_mosaic.version = 11 : i64} {
  func.func @_multi_task_loss_kernel(%arg0: i32, %arg1: i32, %arg2: memref<8x128xf32, #tpu.memory_space<vmem>>, %arg3: memref<8x128xf32, #tpu.memory_space<vmem>>, %arg4: memref<8x16xf32, #tpu.memory_space<vmem>>, %arg5: memref<8x1xi32, #tpu.memory_space<vmem>>, %arg6: memref<1x8x128xf32, #tpu.memory_space<vmem>>, %arg7: memref<8x128xf32, #tpu.memory_space<vmem>>) attributes {dimension_semantics = [#tpu.dimension_semantics<parallel>, #tpu.dimension_semantics<arbitrary>], iteration_bounds = array<i64: 2, 2>, scalar_prefetch = 0 : i64, scratch_operands = 1 : i64, tpu.core_type = #tpu.core_type<tc>, window_params = [{transform_indices = @transform_0, window_bounds = array<i64: 8, 128>}, {transform_indices = @transform_1, window_bounds = array<i64: 8, 128>}, {transform_indices = @transform_2, window_bounds = array<i64: 8, 16>}, {transform_indices = @transform_3, window_bounds = array<i64: 8, 1>}, {transform_indices = @transform_4, window_bounds = array<i64: 1, 8, 128>}]} {
    %c0_i32 = arith.constant 0 : i32
    %0 = arith.cmpi eq, %arg1, %c0_i32 : i32
    %1 = arith.extui %0 : i1 to i32
    %c0_i32_0 = arith.constant 0 : i32
    %2 = arith.cmpi ne, %1, %c0_i32_0 : i32
    scf.if %2 {
      %cst_12 = arith.constant 0.000000e+00 : f32
      %40 = vector.broadcast %cst_12 : f32 to vector<8x128xf32>
      %c0_13 = arith.constant 0 : index
      %c0_14 = arith.constant 0 : index
      %41 = vector.load %arg7[%c0_13, %c0_14] : memref<8x128xf32, #tpu.memory_space<vmem>>, vector<8x128xf32>
      tpu.vector_store %arg7[%c0_13, %c0_14], %40 {strides = array<i32>} : memref<8x128xf32, #tpu.memory_space<vmem>>, vector<8x128xf32>,
    } else {
    }
    %c0 = arith.constant 0 : index
    %c0_1 = arith.constant 0 : index
    %3 = vector.load %arg2[%c0, %c0_1] : memref<8x128xf32, #tpu.memory_space<vmem>>, vector<8x128xf32>
    %c0_2 = arith.constant 0 : index
    %c0_3 = arith.constant 0 : index
    %4 = vector.load %arg3[%c0_2, %c0_3] : memref<8x128xf32, #tpu.memory_space<vmem>>, vector<8x128xf32>
    %cst = arith.constant 0.000000e+00 : f32
    %5 = vector.broadcast %cst : f32 to vector<8x128xf32>
    %6 = arith.maximumf %3, %5 : vector<8x128xf32>
    %7 = arith.mulf %3, %4 : vector<8x128xf32>
    %8 = arith.subf %6, %7 : vector<8x128xf32>
    %9 = math.absf %3 : vector<8x128xf32>
    %cst_4 = arith.constant 0.000000e+00 : f32
    %10 = vector.broadcast %cst_4 : f32 to vector<8x128xf32>
    %11 = arith.subf %10, %9 : vector<8x128xf32>
    %12 = math.exp %11 : vector<8x128xf32>
    %cst_5 = arith.constant 1.000000e+00 : f32
    %13 = vector.broadcast %cst_5 : f32 to vector<8x128xf32>
    %14 = arith.addf %13, %12 : vector<8x128xf32>
    %15 = math.log %14 : vector<8x128xf32>
    %16 = arith.addf %8, %15 : vector<8x128xf32>
    %c8_i32 = arith.constant 8 : i32
    %17 = arith.muli %arg0, %c8_i32 : i32
    %18 = tpu.iota {dimensions = array<i32: 0>} : vector<8x1xi32>
    %19 = vector.broadcast %17 : i32 to vector<8x1xi32>
    %20 = arith.addi %19, %18 : vector<8x1xi32>
    %c12_i32 = arith.constant 12 : i32
    %21 = vector.broadcast %c12_i32 : i32 to vector<8x1xi32>
    %22 = arith.cmpi slt, %20, %21 : vector<8x1xi32>
    %c128_i32 = arith.constant 128 : i32
    %23 = arith.muli %arg1, %c128_i32 : i32
    %24 = tpu.iota {dimensions = array<i32: 1>} : vector<1x128xi32>
    %25 = vector.broadcast %23 : i32 to vector<1x128xi32>
    %26 = arith.addi %25, %24 : vector<1x128xi32>
    %c240_i32 = arith.constant 240 : i32
    %27 = vector.broadcast %c240_i32 : i32 to vector<1x128xi32>
    %28 = arith.cmpi slt, %26, %27 : vector<1x128xi32>
    %29 = vector.broadcast %22 : vector<8x1xi1> to vector<8x128xi1>
    %30 = vector.broadcast %28 : vector<1x128xi1> to vector<8x128xi1>
    %31 = arith.andi %29, %30 : vector<8x128xi1>
    %cst_6 = arith.constant 0.000000e+00 : f32
    %32 = vector.broadcast %cst_6 : f32 to vector<8x128xf32>
    %33 = arith.select %31, %16, %32 : vector<8x128xi1>, vector<8x128xf32>
    %c0_7 = arith.constant 0 : index
    %c0_8 = arith.constant 0 : index
    %34 = vector.load %arg7[%c0_7, %c0_8] : memref<8x128xf32, #tpu.memory_space<vmem>>, vector<8x128xf32>
    %35 = arith.addf %34, %33 : vector<8x128xf32>
    %c0_9 = arith.constant 0 : index
    %c0_10 = arith.constant 0 : index
    %36 = vector.load %arg7[%c0_9, %c0_10] : memref<8x128xf32, #tpu.memory_space<vmem>>, vector<8x128xf32>
    tpu.vector_store %arg7[%c0_9, %c0_10], %35 {strides = array<i32>} : memref<8x128xf32, #tpu.memory_space<vmem>>, vector<8x128xf32>,
    %c1_i32 = arith.constant 1 : i32
    %37 = arith.cmpi eq, %arg1, %c1_i32 : i32
    %38 = arith.extui %37 : i1 to i32
    %c0_i32_11 = arith.constant 0 : i32
    %39 = arith.cmpi ne, %38, %c0_i32_11 : i32
    scf.if %39 {
      %c0_12 = arith.constant 0 : index
      %c0_13 = arith.constant 0 : index
      %40 = vector.load %arg4[%c0_12, %c0_13] : memref<8x16xf32, #tpu.memory_space<vmem>>, vector<8x16xf32>
      %c0_14 = arith.constant 0 : index
      %c0_15 = arith.constant 0 : index
      %41 = vector.load %arg5[%c0_14, %c0_15] : memref<8x1xi32, #tpu.memory_space<vmem>>, vector<8x1xi32>
      %cst_16 = arith.constant dense<0xFF800000> : vector<8xf32>
      %42 = vector.multi_reduction <maximumf>, %40, %cst_16 [1] : vector<8x16xf32> to vector<8xf32>
      %43 = vector.shape_cast %42 : vector<8xf32> to vector<8x1xf32>
      %44 = vector.broadcast %43 : vector<8x1xf32> to vector<8x16xf32>
      %45 = arith.subf %40, %44 : vector<8x16xf32>
      %46 = math.exp %45 : vector<8x16xf32>
      %cst_17 = arith.constant dense<0.000000e+00> : vector<8xf32>
      %47 = vector.multi_reduction <add>, %46, %cst_17 [1] : vector<8x16xf32> to vector<8xf32>
      %48 = vector.shape_cast %47 : vector<8xf32> to vector<8x1xf32>
      %49 = math.log %48 : vector<8x1xf32>
      %50 = arith.addf %49, %43 : vector<8x1xf32>
      %51 = tpu.iota {dimensions = array<i32: 1>} : vector<8x16xi32>
      %52 = vector.broadcast %41 : vector<8x1xi32> to vector<8x16xi32>
      %53 = arith.cmpi eq, %51, %52 : vector<8x16xi32>
      %cst_18 = arith.constant 0.000000e+00 : f32
      %54 = vector.broadcast %cst_18 : f32 to vector<8x16xf32>
      %55 = arith.select %53, %40, %54 : vector<8x16xi1>, vector<8x16xf32>
      %cst_19 = arith.constant dense<0.000000e+00> : vector<8xf32>
      %56 = vector.multi_reduction <add>, %55, %cst_19 [1] : vector<8x16xf32> to vector<8xf32>
      %57 = vector.shape_cast %56 : vector<8xf32> to vector<8x1xf32>
      %58 = arith.subf %50, %57 : vector<8x1xf32>
      %cst_20 = arith.constant 0.000000e+00 : f32
      %59 = vector.broadcast %cst_20 : f32 to vector<8x1xf32>
      %60 = arith.select %22, %58, %59 : vector<8x1xi1>, vector<8x1xf32>
      %c0_21 = arith.constant 0 : index
      %c0_22 = arith.constant 0 : index
      %61 = vector.load %arg7[%c0_21, %c0_22] : memref<8x128xf32, #tpu.memory_space<vmem>>, vector<8x128xf32>
      %62 = vector.shape_cast %61 : vector<8x128xf32> to vector<1x8x128xf32>
      %cst_23 = arith.constant dense<0.000000e+00> : vector<1xf32>
      %63 = vector.multi_reduction <add>, %62, %cst_23 [1, 2] : vector<1x8x128xf32> to vector<1xf32>
      %64 = vector.shape_cast %63 : vector<1xf32> to vector<1x1x1xf32>
      %65 = vector.extract %64[0, 0, 0] : f32 from vector<1x1x1xf32>
      %cst_24 = arith.constant 3.47222231E-4 : f32
      %66 = arith.mulf %65, %cst_24 : f32
      %67 = vector.shape_cast %60 : vector<8x1xf32> to vector<1x8x1xf32>
      %cst_25 = arith.constant dense<0.000000e+00> : vector<1xf32>
      %68 = vector.multi_reduction <add>, %67, %cst_25 [1, 2] : vector<1x8x1xf32> to vector<1xf32>
      %69 = vector.shape_cast %68 : vector<1xf32> to vector<1x1x1xf32>
      %70 = vector.extract %69[0, 0, 0] : f32 from vector<1x1x1xf32>
      %cst_26 = arith.constant 0.0833333358 : f32
      %71 = arith.mulf %70, %cst_26 : f32
      %72 = arith.addf %66, %71 : f32
      %cst_27 = arith.constant 1.000000e+00 : f32
      %73 = vector.broadcast %cst_27 : f32 to vector<1x8x128xf32>
      %74 = vector.broadcast %72 : f32 to vector<1x8x128xf32>
      %75 = arith.mulf %74, %73 : vector<1x8x128xf32>
      %c0_28 = arith.constant 0 : index
      %c0_29 = arith.constant 0 : index
      %c0_30 = arith.constant 0 : index
      %76 = vector.load %arg6[%c0_28, %c0_29, %c0_30] : memref<1x8x128xf32, #tpu.memory_space<vmem>>, vector<1x8x128xf32>
      tpu.vector_store %arg6[%c0_28, %c0_29, %c0_30], %75 {strides = array<i32>} : memref<1x8x128xf32, #tpu.memory_space<vmem>>, vector<1x8x128xf32>,
    } else {
    }
    return
  }
  func.func @transform_0(%arg0: i32, %arg1: i32) -> (i32, i32) {
    %c0_i32 = arith.constant 0 : i32
    return %arg0, %arg1 : i32, i32
  }
  func.func @transform_1(%arg0: i32, %arg1: i32) -> (i32, i32) {
    %c0_i32 = arith.constant 0 : i32
    return %arg0, %arg1 : i32, i32
  }
  func.func @transform_2(%arg0: i32, %arg1: i32) -> (i32, i32) {
    %c0_i32 = arith.constant 0 : i32
    %c0_i32_0 = arith.constant 0 : i32
    return %arg0, %c0_i32 : i32, i32
  }
  func.func @transform_3(%arg0: i32, %arg1: i32) -> (i32, i32) {
    %c0_i32 = arith.constant 0 : i32
    %c0_i32_0 = arith.constant 0 : i32
    return %arg0, %c0_i32 : i32, i32
  }
  func.func @transform_4(%arg0: i32, %arg1: i32) -> (i32, i32, i32) {
    %c0_i32 = arith.constant 0 : i32
    %c0_i32_0 = arith.constant 0 : i32
    %c0_i32_1 = arith.constant 0 : i32
    return %arg0, %c0_i32, %c0_i32_0 : i32, i32, i32
  }
}

</mosaic_0001>

<llo_original>
// kernel: tpu_custom_call.1
$region0: #{tpu_custom_call.1}
  #allocation0 [shape = 'u32[]', space=smem, size = 0x4, offset = 0x4, fixed_abs, tag = 'smem constant byte address 0x4 - core index']
  #allocation1 [shape = 'u32[144,128]{1,0:T(1,128)}', space=vmem, size = 0x12000, scoped, tag = 'internal scratch']
  #allocation2 [shape = 'f32[8,128]{1,0:T(8,128)}', space=vmem, size = 0x1000, scoped, tag = 'scratch operand']
  %s0 = inlined_call_operand.hbm [shape: f32[12,240], index: 0, kind: input, shape index: {}]
  %s1 = inlined_call_operand.hbm [shape: f32[12,240], index: 1, kind: input, shape index: {}]
  %s2 = inlined_call_operand.vmem [shape: f32[12,16], index: 2, kind: input, shape index: {}]
  %s3 = inlined_call_operand.vmem [shape: s32[12,1], index: 3, kind: input, shape index: {}]
  %s4 = inlined_call_operand.hbm [shape: f32[2,8,128], index: 4, kind: output, shape index: {}]
  %s5 = sld [smem:[#allocation0]]
  $region65: #{tpu_custom_call.1} parent=0
    _
  %s7 = ssub.s32 1, %s5
  %s8 = scalar_select 0, %s7, %s5
  $region1: #{tpu_custom_call.1} parent=0
    #allocation3 [shape = 'u8[8192]{0}', space=vmem, size = 0x2000, scoped, tag = 'input window, operand 0']
    #allocation4 [shape = 's32[2]{0}', space=sflag, size = 0x8, scoped, tag = 'scoped memory for tpu_custom_call.1']
    #allocation5 [shape = 's32[2]{0}', space=sflag, size = 0x8, scoped, tag = 'scoped memory for tpu_custom_call.1']
    #allocation6 [shape = 'u8[8192]{0}', space=vmem, size = 0x2000, scoped, tag = 'input window, operand 1']
    #allocation7 [shape = 's32[2]{0}', space=sflag, size = 0x8, scoped, tag = 'scoped memory for tpu_custom_call.1']
    #allocation8 [shape = 'u8[8192]{0}', space=vmem, size = 0x2000, scoped, tag = 'output window, operand 0']
    %9 = vsyncpa [#allocation4], 0
    %s10 = scalar_lea.sflag [#allocation4], 1
    %11 = vsyncpa %s10, 0
    %12 = vsyncpa [#allocation7], 0
    %s13 = scalar_lea.sflag [#allocation7], 1
    %14 = vsyncpa %s13, 0
    %15 = vsyncpa [#allocation5], 0
    %s16 = scalar_lea.sflag [#allocation5], 1
    %17 = vsyncpa %s16, 0
    loop: start=0, step=1, limit=6
    $region2: #{tpu_custom_call.1} parent=1 // loop_pre_header
      _
    $region3: #{tpu_custom_call.1} parent=1 // loop_header
      %s19 = sphi 0, %s23
      %p20 = scmp.ge.s32.totalorder %s19, 6
      %s26 = sphi 0, %s38
      %s27 = sphi 0, %s34
      %s28 = sphi 0, %s26
      %s29 = sphi 0, %s27
      %s30 = sphi 0, %s28
      %s31 = sphi 0, %s29
      %s43 = sphi 0, %s45
      %s46 = sphi 0, %s43
      %s47 = sphi 0, %s46
      %s63 = sphi 0, %s47
      %s71 = sphi 0, %s73
      %s74 = sphi 0, %s71
      %s75 = sphi 0, %s74
      %s91 = sphi 0, %s75
      %s97 = sphi 0, %s99
      %s100 = sphi 0, %s97
      %s101 = sphi 0, %s100
      %s117 = sphi 0, %s101
      %s123 = sphi 0, %s125
      %s126 = sphi 0, %s123
      %s127 = sphi 0, %s126
      %s143 = sphi 0, %s127
      %s149 = sphi 0, %s151
      %s152 = sphi 0, %s149
      %s153 = sphi 0, %s152
      %s169 = sphi 0, %s153
    $region4: #{tpu_custom_call.1} parent=1 // loop_header_branch
      %22 = sbr.rel (%p20) target = $region8
    $region5: #{tpu_custom_call.1} parent=1 // loop_body
      %s24 = ssub.s32 %s19, 1
      %s25 = ssub.s32 %s19, 2
      %s32 = sadd.s32 1, %s27
      %p33 = scmp.ge.s32.totalorder %s32, 2
      %s34 = scalar_select %p33, 0, %s32
      %s35 = sadd.s32 1, %s26
      %s36 = scalar_select %p33, %s35, %s26
      %p37 = scmp.ge.s32.totalorder %s36, 2
      %s38 = scalar_select %p37, 0, %s36
      %s39 = ssub.s32 %s26, %s38
      %s40 = ssub.s32 %s27, %s34
      %s41 = sor.u32 %s39, %s40
      %p42 = scmp.eq.s32.totalorder %s41, 0
      %s44 = sadd.s32 %s43, 1
      %s45 = scalar_select %p42, %s43, %s44
      %p48 = pneg %p42
      %p49 = scmp.eq.s32.totalorder %s19, 3
      %p50 = por %p48, %p49
      %p51 = scmp.ne.s32.totalorder %s43, %s46
      %p52 = scmp.eq.s32.totalorder %s19, 0
      %p53 = por %p51, %p52
      %p54 = scmp.ne.s32.totalorder %s43, %s46
      %p55 = scmp.eq.s32.totalorder %s24, 3
      %p56 = por %p54, %p55
      %p57 = scmp.ne.s32.totalorder %s46, %s47
      %p58 = scmp.eq.s32.totalorder %s24, 0
      %p59 = por %p57, %p58
      %p60 = scmp.ne.s32.totalorder %s46, %s47
      %p61 = scmp.eq.s32.totalorder %s25, 3
      %p62 = por %p60, %p61
      %p64 = scmp.ne.s32.totalorder %s47, %s63
      %p65 = scmp.eq.s32.totalorder %s25, 0
      %p66 = por %p64, %p65
      %s67 = ssub.s32 %s26, %s38
      %s68 = ssub.s32 %s27, %s34
      %s69 = sor.u32 %s67, %s68
      %p70 = scmp.eq.s32.totalorder %s69, 0
      %s72 = sadd.s32 %s71, 1
      %s73 = scalar_select %p70, %s71, %s72
      %p76 = pneg %p70
      %p77 = scmp.eq.s32.totalorder %s19, 3
      %p78 = por %p76, %p77
      %p79 = scmp.ne.s32.totalorder %s71, %s74
      %p80 = scmp.eq.s32.totalorder %s19, 0
      %p81 = por %p79, %p80
      %p82 = scmp.ne.s32.totalorder %s71, %s74
      %p83 = scmp.eq.s32.totalorder %s24, 3
      %p84 = por %p82, %p83
      %p85 = scmp.ne.s32.totalorder %s74, %s75
      %p86 = scmp.eq.s32.totalorder %s24, 0
      %p87 = por %p85, %p86
      %p88 = scmp.ne.s32.totalorder %s74, %s75
      %p89 = scmp.eq.s32.totalorder %s25, 3
      %p90 = por %p88, %p89
      %p92 = scmp.ne.s32.totalorder %s75, %s91
      %p93 = scmp.eq.s32.totalorder %s25, 0
      %p94 = por %p92, %p93
      %s95 = ssub.s32 %s26, %s38
      %p96 = scmp.eq.s32.totalorder %s95, 0
      %s98 = sadd.s32 %s97, 1
      %s99 = scalar_select %p96, %s97, %s98
      %p102 = pneg %p96
      %p103 = scmp.eq.s32.totalorder %s19, 3
      %p104 = por %p102, %p103
      %p105 = scmp.ne.s32.totalorder %s97, %s100
      %p106 = scmp.eq.s32.totalorder %s19, 0
      %p107 = por %p105, %p106
      %p108 = scmp.ne.s32.totalorder %s97, %s100
      %p109 = scmp.eq.s32.totalorder %s24, 3
      %p110 = por %p108, %p109
      %p111 = scmp.ne.s32.totalorder %s100, %s101
      %p112 = scmp.eq.s32.totalorder %s24, 0
      %p113 = por %p111, %p112
      %p114 = scmp.ne.s32.totalorder %s100, %s101
      %p115 = scmp.eq.s32.totalorder %s25, 3
      %p116 = por %p114, %p115
      %p118 = scmp.ne.s32.totalorder %s101, %s117
      %p119 = scmp.eq.s32.totalorder %s25, 0
      %p120 = por %p118, %p119
      %s121 = ssub.s32 %s26, %s38
      %p122 = scmp.eq.s32.totalorder %s121, 0
      %s124 = sadd.s32 %s123, 1
      %s125 = scalar_select %p122, %s123, %s124
      %p128 = pneg %p122
      %p129 = scmp.eq.s32.totalorder %s19, 3
      %p130 = por %p128, %p129
      %p131 = scmp.ne.s32.totalorder %s123, %s126
      %p132 = scmp.eq.s32.totalorder %s19, 0
      %p133 = por %p131, %p132
      %p134 = scmp.ne.s32.totalorder %s123, %s126
      %p135 = scmp.eq.s32.totalorder %s24, 3
      %p136 = por %p134, %p135
      %p137 = scmp.ne.s32.totalorder %s126, %s127
      %p138 = scmp.eq.s32.totalorder %s24, 0
      %p139 = por %p137, %p138
      %p140 = scmp.ne.s32.totalorder %s126, %s127
      %p141 = scmp.eq.s32.totalorder %s25, 3
      %p142 = por %p140, %p141
      %p144 = scmp.ne.s32.totalorder %s127, %s143
      %p145 = scmp.eq.s32.totalorder %s25, 0
      %p146 = por %p144, %p145
      %s147 = ssub.s32 %s26, %s38
      %p148 = scmp.eq.s32.totalorder %s147, 0
      %s150 = sadd.s32 %s149, 1
      %s151 = scalar_select %p148, %s149, %s150
      %p154 = pneg %p148
      %p155 = scmp.eq.s32.totalorder %s19, 3
      %p156 = por %p154, %p155
      %p157 = scmp.ne.s32.totalorder %s149, %s152
      %p158 = scmp.eq.s32.totalorder %s19, 0
      %p159 = por %p157, %p158
      %p160 = scmp.ne.s32.totalorder %s149, %s152
      %p161 = scmp.eq.s32.totalorder %s24, 3
      %p162 = por %p160, %p161
      %p163 = scmp.ne.s32.totalorder %s152, %s153
      %p164 = scmp.eq.s32.totalorder %s24, 0
      %p165 = por %p163, %p164
      %p166 = scmp.ne.s32.totalorder %s152, %s153
      %p167 = scmp.eq.s32.totalorder %s25, 3
      %p168 = por %p166, %p167
      %p170 = scmp.ne.s32.totalorder %s153, %s169
      %p171 = scmp.eq.s32.totalorder %s25, 0
      %p172 = por %p170, %p171
      %p173 = scmp.le.s32.totalorder 1, %s19
      %p174 = scmp.lt.s32.totalorder %s19, 5
      %p175 = pnand %p173, %p174
      %p176 = pneg %p175
      // Predicated region
      $region9: #{tpu_custom_call.1} parent=5 // pred_check
        _
      $region10: #{tpu_custom_call.1} parent=5 // pred_check_branch
        %178 = sbr.rel (%p175) target = $region12
      $region11: #{tpu_custom_call.1} parent=5 // pred_region
        %s179 = ssub.s32 %s19, 1
      $region12: #{tpu_custom_call.1} parent=5 // pred_fallthru
        _
      %p180 = scmp.lt.s32.totalorder %s19, 4
      // Predicated region
      $region13: #{tpu_custom_call.1} parent=5 // pred_check
        %p181 = pneg %p180
      $region14: #{tpu_custom_call.1} parent=5 // pred_check_branch
        %183 = sbr.rel (%p181) target = $region16
      $region15: #{tpu_custom_call.1} parent=5 // pred_region
        // Predicated region
        $region17: #{tpu_custom_call.1} parent=15 // pred_check
          %p184 = pneg %p53
        $region18: #{tpu_custom_call.1} parent=15 // pred_check_branch
          %186 = sbr.rel (%p184) target = $region20
        $region19: #{tpu_custom_call.1} parent=15 // pred_region
          %s187 = sand.u32 %s43, 1
          %s188 = scalar_lea.sflag [#allocation4], %s187
          %s189 = sand.u32 %s43, 1
          %s190 = smul.addr %s189, 8
          %s191 = scalar_lea.vmem [#allocation3], %s190
          %s193 = ssub.s32 128, 128
          %194 = vsyncadd %s188, %s193
          %s195 = smul.addr %s26, 2
          %s196 = sadd.s32 %s27, %s195
          %s197 = smul.addr %s196, 128
          %s198 = scalar_lea.hbm %s0, %s197
          %s200 = sshll.u32 %s191, 4
          %s201 = int_to_ptr.vmem [resolvable:$true] %s200
          %203 = dma.hbm_to_vmem [thread:$0]  %s198, 128, %s201, %s188
        $region20: #{tpu_custom_call.1} parent=15 // pred_fallthru
          _
        // Predicated region
        $region21: #{tpu_custom_call.1} parent=15 // pred_check
          %p204 = pneg %p81
        $region22: #{tpu_custom_call.1} parent=15 // pred_check_branch
          %206 = sbr.rel (%p204) target = $region24
        $region23: #{tpu_custom_call.1} parent=15 // pred_region
          %s207 = sand.u32 %s71, 1
          %s208 = scalar_lea.sflag [#allocation7], %s207
          %s209 = sand.u32 %s71, 1
          %s210 = smul.addr %s209, 8
          %s211 = scalar_lea.vmem [#allocation6], %s210
          %s213 = ssub.s32 128, 128
          %214 = vsyncadd %s208, %s213
          %s215 = smul.addr %s26, 2
          %s216 = sadd.s32 %s27, %s215
          %s217 = smul.addr %s216, 128
          %s218 = scalar_lea.hbm %s1, %s217
          %s220 = sshll.u32 %s211, 4
          %s221 = int_to_ptr.vmem [resolvable:$true] %s220
          %223 = dma.hbm_to_vmem [thread:$0]  %s218, 128, %s221, %s208
        $region24: #{tpu_custom_call.1} parent=15 // pred_fallthru
          _
        // Predicated region
        $region25: #{tpu_custom_call.1} parent=15 // pred_check
          %p224 = pneg %p107
        $region26: #{tpu_custom_call.1} parent=15 // pred_check_branch
          %226 = sbr.rel (%p224) target = $region28
        $region27: #{tpu_custom_call.1} parent=15 // pred_region
          %p227 = scmp.lt.s32.totalorder %s26, 1
          %s228 = scalar_select %p227, %s26, 1
          %s229 = smul.addr %s228, 8
          %s230 = scalar_lea.vmem %s2, %s229
        $region28: #{tpu_custom_call.1} parent=15 // pred_fallthru
          _
        // Predicated region
        $region29: #{tpu_custom_call.1} parent=15 // pred_check
          %p231 = pneg %p133
        $region30: #{tpu_custom_call.1} parent=15 // pred_check_branch
          %233 = sbr.rel (%p231) target = $region32
        $region31: #{tpu_custom_call.1} parent=15 // pred_region
          %p234 = scmp.lt.s32.totalorder %s26, 1
          %s235 = scalar_select %p234, %s26, 1
          %s236 = smul.addr %s235, 8
          %s237 = scalar_lea.vmem %s3, %s236
        $region32: #{tpu_custom_call.1} parent=15 // pred_fallthru
          _
      $region16: #{tpu_custom_call.1} parent=5 // pred_fallthru
        _
      %p238 = scmp.le.s32.totalorder 1, %s19
      %p239 = scmp.lt.s32.totalorder %s19, 5
      %p240 = pnand %p238, %p239
      %p241 = pneg %p240
      // Predicated region
      $region33: #{tpu_custom_call.1} parent=5 // pred_check
        _
      $region34: #{tpu_custom_call.1} parent=5 // pred_check_branch
        %243 = sbr.rel (%p240) target = $region36
      $region35: #{tpu_custom_call.1} parent=5 // pred_region
        %s244 = ssub.s32 %s19, 1
        %s245 = sand.u32 %s46, 1
        %s246 = scalar_lea.sflag [#allocation4], %s245
        %s247 = sand.u32 %s46, 1
        %s248 = smul.addr %s247, 8
        %s249 = scalar_lea.vmem [#allocation3], %s248
        // Predicated region
        $region37: #{tpu_custom_call.1} parent=35 // pred_check
          %p250 = pneg %p59
        $region38: #{tpu_custom_call.1} parent=35 // pred_check_branch
          %252 = sbr.rel (%p250) target = $region40
        $region39: #{tpu_custom_call.1} parent=35 // pred_region
          %253 = dma.done %s246, 128
        $region40: #{tpu_custom_call.1} parent=35 // pred_fallthru
          _
        %s254 = sand.u32 %s74, 1
        %s255 = scalar_lea.sflag [#allocation7], %s254
        %s256 = sand.u32 %s74, 1
        %s257 = smul.addr %s256, 8
        %s258 = scalar_lea.vmem [#allocation6], %s257
        // Predicated region
        $region41: #{tpu_custom_call.1} parent=35 // pred_check
          %p259 = pneg %p87
        $region42: #{tpu_custom_call.1} parent=35 // pred_check_branch
          %261 = sbr.rel (%p259) target = $region44
        $region43: #{tpu_custom_call.1} parent=35 // pred_region
          %262 = dma.done %s255, 128
        $region44: #{tpu_custom_call.1} parent=35 // pred_fallthru
          _
        %s263 = sand.u32 %s46, 1
        %s264 = scalar_lea.sflag [#allocation4], %s263
        %s265 = sand.u32 %s46, 1
        %s266 = smul.addr %s265, 8
        %s267 = scalar_lea.vmem [#allocation3], %s266
        %p268 = pneg %p59
        %p269 = pneg %p56
        %s270 = sand.u32 %s74, 1
        %s271 = scalar_lea.sflag [#allocation7], %s270
        %s272 = sand.u32 %s74, 1
        %s273 = smul.addr %s272, 8
        %s274 = scalar_lea.vmem [#allocation6], %s273
        %p275 = pneg %p87
        %p276 = pneg %p84
        %p277 = scmp.lt.s32.totalorder %s28, 1
        %s278 = scalar_select %p277, %s28, 1
        %s279 = smul.addr %s278, 8
        %s280 = scalar_lea.vmem %s2, %s279
        %p281 = pneg %p113
        %p282 = pneg %p110
        %p283 = scmp.lt.s32.totalorder %s28, 1
        %s284 = scalar_select %p283, %s28, 1
        %s285 = smul.addr %s284, 8
        %s286 = scalar_lea.vmem %s3, %s285
        %p287 = pneg %p139
        %p288 = pneg %p136
        %p289 = pneg %p165
        %p290 = pneg %p162
        %s291 = sand.u32 %s152, 1
        %s292 = scalar_lea.sflag [#allocation5], %s291
        %s293 = sand.u32 %s152, 1
        %s294 = smul.addr %s293, 8
        %s295 = scalar_lea.vmem [#allocation8], %s294
        %p296 = scmp.lt.s32.totalorder %s28, 1
        %s297 = scalar_select %p296, %s28, 1
        %s298 = smul.addr %s297, 8
        %s299 = scalar_lea.vmem %s2, %s298
        %p300 = scmp.lt.s32.totalorder %s28, 1
        %s301 = scalar_select %p300, %s28, 1
        %s302 = smul.addr %s301, 8
        %s303 = scalar_lea.vmem %s3, %s302
        %p304 = scmp.eq.s32.totalorder %s29, 0
        // Predicated region
        $region45: #{tpu_custom_call.1} parent=35 // pred_check
          %p305 = pneg %p304
        $region46: #{tpu_custom_call.1} parent=35 // pred_check_branch
          %307 = sbr.rel (%p305) target = $region48
        $region47: #{tpu_custom_call.1} parent=35 // pred_region
          %308 = vst [vmem:[#allocation2] sm:$0xff] 0.0
        $region48: #{tpu_custom_call.1} parent=35 // pred_fallthru
          _
        %v309 = vld [vmem:[%s249] sm:$0xff]
        %v310 = vld [vmem:[%s258] sm:$0xff]
        %v311 = vmax.f32 %v309, 0.0
        %v312 = vmul.f32 %v309, %v310
        %v313 = vsub.f32 %v311, %v312
        %v314 = vand.u32 2147483647, %v309
        %v315 = vsub.f32 0.0, %v314
        %v316 = vmul.f32 %v315, 1.442695
        %v317 = vpow.pop %v316
        %v318 = vadd.f32 %v317, 1.0
        %v319 = vlog2.pop %v318
        %v320 = vmul.f32 %v319, 0.6931472
        %v321 = vadd.f32 %v313, %v320
        %s322 = smul.u32 %s28, 8
        %v323 = vlaneseq
        %v324 = vshrl.u32 %v323, 7
        %v325 = vstv %s322
        %v326 = vadd.s32 %v325, %v324
        %vm327 = vcmp.lt.s32.totalorder %v326, 12
        %s328 = smul.u32 %s29, 128
        %v329 = vlaneseq
        %v330 = vand.u32 %v329, 127
        %v331 = vstv %s328
        %v332 = vadd.s32 %v331, %v330
        %vm333 = vcmp.lt.s32.totalorder %v332, 240
        %v334 = vsel %vm327, 1, 0
        %vm335 = vcmp.eq.s32.totalorder %v334, 1
        %v336 = vsel %vm333, 1, 0
        %vm337 = vcmp.eq.s32.totalorder %v336, 1
        %vm338 = vmand %vm335, %vm337
        %v339 = vsel %vm338, %v321, 0.0
        %v340 = vld [vmem:[#allocation2] sm:$0xff]
        %v341 = vadd.f32 %v340, %v339
        %342 = vst [vmem:[#allocation2] sm:$0xff] %v341
        %p343 = scmp.eq.s32.totalorder %s29, 1
        // Predicated region
        $region49: #{tpu_custom_call.1} parent=35 // pred_check
          %p344 = pneg %p343
        $region50: #{tpu_custom_call.1} parent=35 // pred_check_branch
          %346 = sbr.rel (%p344) target = $region52
        $region51: #{tpu_custom_call.1} parent=35 // pred_region
          %v347 = vld [vmem:[%s299] sm:$0xff]
          %v348 = vld [vmem:[%s303] sm:$0xff]
          %vm349 = vcmask 130048
          %v350 = vsel %vm349, %v347, -inf
          %351 = vmax.xlane.f32.xlu0 %v350
          %v352 = vpop.xlane.xlu0 %351
          %v353 = vsub.f32 %v347, %v352
          %v354 = vmul.f32 %v353, 1.442695
          %v355 = vpow.pop %v354
          %v356 = vsel %vm349, %v355, 0.0
          %357 = vadd.xlane.f32.xlu0 %v356
          %v358 = vpop.xlane.xlu0 %357
          %v359 = vlog2.pop %v358
          %v360 = vmul.f32 %v359, 0.6931472
          %v361 = vadd.f32 %v360, %v352
          %362 = vset.pattern.permute.xlu0 0
          %363 = vperm.xlu0 %362, %v348
          %v364 = vpop.permute.xlu0 %363
          %vm365 = vcmp.eq.s32.totalorder %v330, %v364
          %v366 = vsel %vm365, %v347, 0.0
          %v367 = vsel %vm349, %v366, 0.0
          %368 = vadd.xlane.f32.xlu0 %v367
          %v369 = vpop.xlane.xlu0 %368
          %v370 = vsub.f32 %v361, %v369
          %v371 = vsel %vm327, %v370, 0.0
          %v372 = vld [vmem:[#allocation2] sm:$0xff]
          %373 = vadd.xlane.f32.xlu0 %v372
          %v374 = vpop.xlane.xlu0 %373
          %v375 = vrot.slane %v374, 4
          %v376 = vadd.f32 %v374, %v375
          %v377 = vrot.slane %v376, 2
          %v378 = vadd.f32 %v376, %v377
          %v379 = vrot.slane %v378, 1
          %v380 = vadd.f32 %v378, %v379
          %s381 = vtos %v380
          %s382 = smul.f32 %s381, 0.00034722223
          %vm383 = vcmask 7168
          %v384 = vsel %vm383, %v371, 0.0
          %385 = vadd.xlane.f32.xlu0 %v384
          %v386 = vpop.xlane.xlu0 %385
          %v387 = vrot.slane %v386, 4
          %v388 = vadd.f32 %v386, %v387
          %v389 = vrot.slane %v388, 2
          %v390 = vadd.f32 %v388, %v389
          %v391 = vrot.slane %v390, 1
          %v392 = vadd.f32 %v390, %v391
          %s393 = vtos %v392
          %s394 = smul.f32 %s393, 0.083333336
          %s395 = sadd.f32 %s382, %s394
          %v396 = vstv %s395
          %397 = vst [vmem:[%s295] sm:$0xff] %v396
        $region52: #{tpu_custom_call.1} parent=35 // pred_fallthru
          _
        %s398 = sand.u32 %s152, 1
        %s399 = scalar_lea.sflag [#allocation5], %s398
        %s400 = sand.u32 %s152, 1
        %s401 = smul.addr %s400, 8
        %s402 = scalar_lea.vmem [#allocation8], %s401
        // Predicated region
        $region53: #{tpu_custom_call.1} parent=35 // pred_check
          %p403 = pneg %p162
        $region54: #{tpu_custom_call.1} parent=35 // pred_check_branch
          %405 = sbr.rel (%p403) target = $region56
        $region55: #{tpu_custom_call.1} parent=35 // pred_region
          %s407 = ssub.s32 128, 128
          %408 = vsyncadd %s399, %s407
          %s409 = smul.addr %s28, 128
          %s410 = scalar_lea.hbm %s4, %s409
          %s412 = sshll.u32 %s402, 4
          %s413 = int_to_ptr.vmem [resolvable:$true] %s412
          %415 = dma.vmem_to_hbm [thread:$0]  %s413, 128, %s410, %s399
        $region56: #{tpu_custom_call.1} parent=35 // pred_fallthru
          _
      $region36: #{tpu_custom_call.1} parent=5 // pred_fallthru
        _
      %p416 = scmp.le.s32.totalorder 2, %s19
      // Predicated region
      $region57: #{tpu_custom_call.1} parent=5 // pred_check
        %p417 = pneg %p416
      $region58: #{tpu_custom_call.1} parent=5 // pred_check_branch
        %419 = sbr.rel (%p417) target = $region60
      $region59: #{tpu_custom_call.1} parent=5 // pred_region
        %s420 = ssub.s32 %s19, 2
        // Predicated region
        $region61: #{tpu_custom_call.1} parent=59 // pred_check
          %p421 = pneg %p168
        $region62: #{tpu_custom_call.1} parent=59 // pred_check_branch
          %423 = sbr.rel (%p421) target = $region64
        $region63: #{tpu_custom_call.1} parent=59 // pred_region
          %s424 = sand.u32 %s153, 1
          %s425 = scalar_lea.sflag [#allocation5], %s424
          %s426 = sand.u32 %s153, 1
          %s427 = smul.addr %s426, 8
          %s428 = scalar_lea.vmem [#allocation8], %s427
          %429 = dma.done %s425, 128
        $region64: #{tpu_custom_call.1} parent=59 // pred_fallthru
          _
      $region60: #{tpu_custom_call.1} parent=5 // pred_fallthru
        _
    $region6: #{tpu_custom_call.1} parent=1 // loop_footer
      %s23 = sadd.s32 1, %s19
    $region7: #{tpu_custom_call.1} parent=1 // loop_footer_branch
      %18 = sbr.rel target = $region3
    $region8: #{tpu_custom_call.1} parent=1 // loop_exit
      _
    %430 = vsyncpa [#allocation4], 1
    %s431 = scalar_lea.sflag [#allocation4], 1
    %432 = vsyncpa %s431, 1
    %433 = vsyncpa [#allocation7], 1
    %s434 = scalar_lea.sflag [#allocation7], 1
    %435 = vsyncpa %s434, 1
    %436 = vsyncpa [#allocation5], 1
    %s437 = scalar_lea.sflag [#allocation5], 1
    %438 = vsyncpa %s437, 1

</llo_original>
